<compile_context>
chip_gen: v5e
topology: v5e:2x2
jax: 0.10.0
libtpu: 0.0.40
codegen_flags: <defaults>
</compile_context>

<pallas_src>
import jax
import jax.numpy as jnp
from jax.experimental import pallas as pl
from jax.experimental.pallas import tpu as pltpu


def _round_up(x: int, m: int) -> int:
    return ((x + m - 1) // m) * m


def _codebook_encode_kernel(xt_ref, o_ref):
    """xt_ref: (D, TILE_N) f32, o_ref: (1, TILE_N) i32."""
    x = xt_ref[...]                                     # (D, T) f32
    d, t = x.shape
    # per-sublane weight 2^d (exact in f32 for d < 24), computed on the EUP
    row = jax.lax.broadcasted_iota(jnp.int32, (d, t), 0)
    pow2 = jnp.exp2(row.astype(jnp.float32))            # (D, T)
    # bit_d = [x_d > 0.5]; strict '>' gives bit 0 on ties -> lowest index,
    # identical to torch.max's first-occurrence tie-breaking.
    vals = jnp.where(x > 0.5, pow2, 0.0)                # (D, T) VPU select
    idx = jnp.sum(vals, axis=0, keepdims=True)          # (1, T) sublane reduce
    o_ref[...] = idx.astype(jnp.int32)


def make_code_vectors(total_bins: int) -> jnp.ndarray:
    """All binary codes: row i holds the little-endian bits of i (float32)."""
    ids = jnp.arange(2 ** total_bins, dtype=jnp.int32)[:, None]   # (C, 1)
    bits = jnp.arange(total_bins, dtype=jnp.int32)[None, :]       # (1, D)
    return ((ids >> bits) & 1).astype(jnp.float32)                # (C, D)


class CodebookPallas:
    # Tile over N.  (D + 1) * 4 B * TILE_N * 2 double-buffers ~= 150 KiB at
    # TILE_N=2048 -> far inside the scoped VMEM budget on v5e/v6e/v7x.
    TILE_N = 2048

    def __init__(self, bin_frames):
        self.bin_frames = list(bin_frames)
        self.n_bins = len(self.bin_frames)
        self.total_bins = self.n_bins * 2
        self.n_classes = 2 ** self.total_bins
        # int32 indices / exact f32 accumulation both require total_bins < 25.
        assert self.total_bins <= 24, "code index would overflow int32/f32"
        # nn.Embedding weight, kept only for decode()/reference checks — the
        # encode kernel no longer needs it at all.
        self.emb_weight = make_code_vectors(self.total_bins)      # (C, D)

    def __call__(self, projection_windows: jnp.ndarray) -> jnp.ndarray:
        return self.encode(projection_windows)

    def encode(self, x: jnp.ndarray) -> jnp.ndarray:
        assert x.shape[-2:] == (2, self.n_bins), (
            f"Codebook expects (..., 2, {self.n_bins}) got {x.shape}")
        lead = x.shape[:-2]
        D = self.total_bins

        flat = x.reshape(-1, D).astype(jnp.float32)               # (N, D)
        N = flat.shape[0]

        # Pick a lane-aligned tile and pad N up to a multiple of it.
        tile_n = min(self.TILE_N, _round_up(N, 128))
        n_pad = _round_up(N, tile_n)

        xt = flat.T                                               # (D, N) lane-dense
        if n_pad != N:
            xt = jnp.pad(xt, ((0, 0), (0, n_pad - N)))            # pads -> idx 0

        out = pl.pallas_call(
            _codebook_encode_kernel,
            out_shape=jax.ShapeDtypeStruct((1, n_pad), jnp.int32),
            grid=(n_pad // tile_n,),
            in_specs=[pl.BlockSpec((D, tile_n), lambda i: (0, i))],
            out_specs=pl.BlockSpec((1, tile_n), lambda i: (0, i)),
            compiler_params=pltpu.CompilerParams(
                dimension_semantics=("parallel",)),
        )(xt)

        return out[0, :N].reshape(lead)

    # TODO(synk): decode() (embedding lookup) is not needed by forward(); not ported.


if __name__ == "__main__":
    # bin_frames of length 4 -> n_bins=4, total_bins=8, n_classes=256
    codebook = CodebookPallas(bin_frames=[20, 40, 60, 80])

    key = jax.random.PRNGKey(0)
    # projection windows: (batch=2, seq=8, 2, n_bins=4)
    x = jax.random.uniform(key, (2, 8, 2, 4), dtype=jnp.float32)

    idx = codebook(x)
    idx = jax.block_until_ready(idx)

    # pure-JAX reference of the original PyTorch encode semantics
    # (distance to every codebook vector + argmax)
    flat = x.reshape(-1, codebook.total_bins)
    embed = codebook.emb_weight.T
    dist = -(jnp.sum(flat ** 2, axis=1, keepdims=True)
             - 2.0 * flat @ embed
             + jnp.sum(embed ** 2, axis=0, keepdims=True))
    ref = jnp.argmax(dist, axis=-1).reshape(x.shape[:-2]).astype(jnp.int32)
    assert idx.shape == x.shape[:-2]
    assert idx.dtype == jnp.int32
    assert bool(jnp.all(idx == ref))

    print("KERNEL_OK")
</pallas_src>

<mosaic_0001>
module attributes {stable_mosaic.version = 11 : i64} {
  func.func @_codebook_encode_kernel(%arg0: i32, %arg1: memref<8x128xf32, #tpu.memory_space<vmem>>, %arg2: memref<1x128xi32, #tpu.memory_space<vmem>>) attributes {dimension_semantics = [#tpu.dimension_semantics<parallel>], iteration_bounds = array<i64: 1>, scalar_prefetch = 0 : i64, scratch_operands = 0 : i64, tpu.core_type = #tpu.core_type<tc>, window_params = [{transform_indices = @transform_0, window_bounds = array<i64: 8, 128>}, {transform_indices = @transform_1, window_bounds = array<i64: 1, 128>}]} {
    %c0 = arith.constant 0 : index
    %c0_0 = arith.constant 0 : index
    %0 = vector.load %arg1[%c0, %c0_0] : memref<8x128xf32, #tpu.memory_space<vmem>>, vector<8x128xf32>
    %1 = tpu.iota {dimensions = array<i32: 0>} : vector<8x128xi32>
    %2 = arith.sitofp %1 : vector<8x128xi32> to vector<8x128xf32>
    %3 = math.exp2 %2 : vector<8x128xf32>
    %cst = arith.constant 5.000000e-01 : f32
    %4 = vector.broadcast %cst : f32 to vector<8x128xf32>
    %5 = arith.cmpf ogt, %0, %4 : vector<8x128xf32>
    %cst_1 = arith.constant 0.000000e+00 : f32
    %6 = vector.broadcast %cst_1 : f32 to vector<8x128xf32>
    %7 = arith.select %5, %3, %6 : vector<8x128xi1>, vector<8x128xf32>
    %cst_2 = arith.constant dense<0.000000e+00> : vector<128xf32>
    %8 = vector.multi_reduction <add>, %7, %cst_2 [0] : vector<8x128xf32> to vector<128xf32>
    %9 = vector.shape_cast %8 : vector<128xf32> to vector<1x128xf32>
    %10 = arith.fptosi %9 : vector<1x128xf32> to vector<1x128xi32>
    %c0_3 = arith.constant 0 : index
    %c0_4 = arith.constant 0 : index
    %11 = vector.load %arg2[%c0_3, %c0_4] : memref<1x128xi32, #tpu.memory_space<vmem>>, vector<1x128xi32>
    tpu.vector_store %arg2[%c0_3, %c0_4], %10 {strides = array<i32>} : memref<1x128xi32, #tpu.memory_space<vmem>>, vector<1x128xi32>,
    return
  }
  func.func @transform_0(%arg0: i32) -> (i32, i32) {
    %c0_i32 = arith.constant 0 : i32
    %c0_i32_0 = arith.constant 0 : i32
    return %c0_i32, %arg0 : i32, i32
  }
  func.func @transform_1(%arg0: i32) -> (i32, i32) {
    %c0_i32 = arith.constant 0 : i32
    %c0_i32_0 = arith.constant 0 : i32
    return %c0_i32, %arg0 : i32, i32
  }
}

</mosaic_0001>

<llo_original>
// kernel: tpu_custom_call.1
$region0: #{tpu_custom_call.1}
  #allocation0 [shape = 'u32[]', space=smem, size = 0x4, offset = 0x4, fixed_abs, tag = 'smem constant byte address 0x4 - core index']
  #allocation1 [shape = 'u32[72,128]{1,0:T(1,128)}', space=vmem, size = 0x9000, scoped, tag = 'internal scratch']
  %s0 = inlined_call_operand.hbm [shape: f32[8,128], index: 0, kind: input, shape index: {}]
  %s1 = inlined_call_operand.hbm [shape: s32[1,128], index: 1, kind: output, shape index: {}]
  %s2 = sld [smem:[#allocation0]]
  $region18: #{tpu_custom_call.1} parent=0
    _
  %s4 = ssub.s32 1, %s2
  %s5 = scalar_select 0, %s4, %s2
  $region1: #{tpu_custom_call.1} parent=0
    #allocation2 [shape = 'u8[4096]{0}', space=vmem, size = 0x1000, scoped, tag = 'input window, operand 0, single buffered']
    #allocation3 [shape = 's32[1]{0}', space=sflag, size = 0x4, scoped, tag = 'scoped memory for tpu_custom_call.1']
    #allocation4 [shape = 's32[1]{0}', space=sflag, size = 0x4, scoped, tag = 'scoped memory for tpu_custom_call.1']
    #allocation5 [shape = 'u8[512]{0}', space=vmem, size = 0x400, scoped, tag = 'output window, operand 0, single buffered']
    %6 = vsyncpa [#allocation3], 0
    %7 = vsyncpa [#allocation4], 0
    // Predicated region
    $region2: #{tpu_custom_call.1} parent=1 // pred_check
      _
    $region3: #{tpu_custom_call.1} parent=1 // pred_check_branch
      %9 = sbr.rel (0) target = $region5
    $region4: #{tpu_custom_call.1} parent=1 // pred_region
      %11 = vsyncadd [#allocation3], 0
      %s13 = sshll.u32 %s0, 4
      %s14 = int_to_ptr.hbm [resolvable:$true] %s13
      %s15 = sshll.u32 [#allocation2], 4
      %s16 = int_to_ptr.vmem [resolvable:$true] %s15
      %18 = dma.hbm_to_vmem [thread:$0]  %s14, 128, %s16, [#allocation3]
    $region5: #{tpu_custom_call.1} parent=1 // pred_fallthru
      _
    // Predicated region
    $region6: #{tpu_custom_call.1} parent=1 // pred_check
      _
    $region7: #{tpu_custom_call.1} parent=1 // pred_check_branch
      %20 = sbr.rel (0) target = $region9
    $region8: #{tpu_custom_call.1} parent=1 // pred_region
      %22 = dma.done [#allocation3], 128
    $region9: #{tpu_custom_call.1} parent=1 // pred_fallthru
      _
    %v23 = vld [vmem:[#allocation2] sm:$0xff]
    %v24 = vlaneseq
    %v25 = vshrl.u32 %v24, 7
    %v26 = vcvt.s32.f32 %v25
    %v27 = vpow.pop %v26
    %vm28 = vcmp.gt.f32.partialorder %v23, 0.5
    %v29 = vsel %vm28, %v27, 0.0
    %v30 = vrot.slane %v29, 4
    %v31 = vadd.f32 %v29, %v30
    %v32 = vrot.slane %v31, 2
    %v33 = vadd.f32 %v31, %v32
    %v34 = vrot.slane %v33, 1
    %v35 = vadd.f32 %v33, %v34
    %v36 = vcvt.f32.s32.to.zero.pseudo %v35
    %37 = vst [vmem:[#allocation5] sm:$0x1] %v36
    // Predicated region
    $region10: #{tpu_custom_call.1} parent=1 // pred_check
      _
    $region11: #{tpu_custom_call.1} parent=1 // pred_check_branch
      %39 = sbr.rel (0) target = $region13
    $region12: #{tpu_custom_call.1} parent=1 // pred_region
      %41 = vsyncadd [#allocation4], 0
      %s43 = sshll.u32 [#allocation5], 4
      %s44 = int_to_ptr.vmem [resolvable:$true] %s43
      %s45 = sshll.u32 %s1, 4
      %s46 = int_to_ptr.hbm [resolvable:$true] %s45
      %48 = dma.vmem_to_hbm [thread:$0]  %s44, 16, %s46, [#allocation4]
    $region13: #{tpu_custom_call.1} parent=1 // pred_fallthru
      _
    // Predicated region
    $region14: #{tpu_custom_call.1} parent=1 // pred_check
      _
    $region15: #{tpu_custom_call.1} parent=1 // pred_check_branch
      %50 = sbr.rel (0) target = $region17
    $region16: #{tpu_custom_call.1} parent=1 // pred_region
      %52 = dma.done [#allocation4], 16
    $region17: #{tpu_custom_call.1} parent=1 // pred_fallthru
      _
    %53 = vsyncpa [#allocation3], 1
    %54 = vsyncpa [#allocation4], 1

</llo_original>
